<compile_context>
chip_gen: v6e
topology: v6e:2x2x1
jax: 0.10.0
libtpu: 0.0.40
codegen_flags: <defaults>
</compile_context>

<pallas_src>
import functools

import jax
import jax.numpy as jnp
from jax.experimental import pallas as pl
from jax.experimental.pallas import tpu as pltpu


def _round_up(n, m):
    return ((n + m - 1) // m) * m


# ----------------------------- Pallas kernel ---------------------------------

def _actor_critic_kernel(x_ref, w1_ref, w2_ref, wh_ref, b_ref, out_ref, *,
                         hidden_dim, head_width):
    """Fused actor/critic forward for one batch tile.

    out layout (lane axis): [hidden_actor (H) | logits (A) | value (1) | zero pad].
    """
    H = hidden_dim
    x = x_ref[...]

    b1 = b_ref[0:1, 0:2 * H]          # fused layer-1 bias  (actor | critic)
    b2 = b_ref[1:2, 0:2 * H]          # fused layer-2 bias
    bh = b_ref[2:3, 0:head_width]     # fused head bias     (logits | value | 0)

    # layer 1: x @ [wa1 | wc1]  -> (TM, 2H), ReLU
    h1 = jnp.maximum(
        jnp.dot(x, w1_ref[...], preferred_element_type=jnp.float32) + b1, 0.0)
    # layer 2: h1 @ blockdiag(wa2, wc2) -> (TM, 2H), ReLU
    #          cols 0:H  = actor hidden, cols H:2H = critic hidden
    h2 = jnp.maximum(
        jnp.dot(h1, w2_ref[...], preferred_element_type=jnp.float32) + b2, 0.0)
    # fused head: logits (from actor half) and value (from critic half) in one pass
    head = jnp.dot(h2, wh_ref[...], preferred_element_type=jnp.float32) + bh

    # single lane-dense full-width store: [hidden_actor | head(logits,value,pad)]
    out_ref[...] = jnp.concatenate([h2[:, :H], head], axis=-1).astype(out_ref.dtype)


# ------------------------------- wrapper --------------------------------------

def actor_critic_forward(x, fused, *, hidden_dim, n_actions, block_m=256):
    """Runs the fused ActorCriticPolicy forward.

    Returns (value [B,1], hidden_actor [B,H], action_logits [B,A]),
    matching MLPBase.forward + the Categorical dist's logits.
    """
    B, obs_dim = x.shape
    H = hidden_dim
    head_w = fused["wh"].shape[1]
    out_w = H + head_w                       # multiple of 128 by construction

    # Batch tile: multiple of 8 sublanes; large tiles amortize the per-step cost.
    tm = min(block_m, _round_up(max(B, 1), 8))
    b_pad = _round_up(B, tm)
    if b_pad != B:
        x = jnp.pad(x, ((0, b_pad - B), (0, 0)))
    grid_m = b_pad // tm

    kernel = functools.partial(
        _actor_critic_kernel, hidden_dim=H, head_width=head_w)

    out = pl.pallas_call(
        kernel,
        out_shape=jax.ShapeDtypeStruct((b_pad, out_w), jnp.float32),
        grid_spec=pltpu.PrefetchScalarGridSpec(
            num_scalar_prefetch=0,
            grid=(grid_m,),
            in_specs=[
                # only x is tiled over the batch grid
                pl.BlockSpec((tm, obs_dim), lambda i: (i, 0)),
                # weights / biases: constant block index -> VMEM-resident across steps
                pl.BlockSpec(fused["w1"].shape, lambda i: (0, 0)),
                pl.BlockSpec(fused["w2"].shape, lambda i: (0, 0)),
                pl.BlockSpec(fused["wh"].shape, lambda i: (0, 0)),
                pl.BlockSpec(fused["b"].shape, lambda i: (0, 0)),
            ],
            out_specs=pl.BlockSpec((tm, out_w), lambda i: (i, 0)),
        ),
        compiler_params=pltpu.CompilerParams(
            dimension_semantics=("parallel",)),   # v7x: shard batch across both TCs
    )(x, fused["w1"], fused["w2"], fused["wh"], fused["b"])

    hidden_actor = out[:B, 0:H]
    logits = out[:B, H:H + n_actions]
    value = out[:B, H + n_actions:H + n_actions + 1]
    return value, hidden_actor, logits


# --------------------------- parameter construction ---------------------------

def _orthogonal(key, shape, gain):
    """Deterministic orthogonal init (torch.nn.init.orthogonal_ semantics)."""
    rows, cols = shape
    n, m = max(rows, cols), min(rows, cols)
    a = jax.random.normal(key, (n, m), dtype=jnp.float32)
    q, r = jnp.linalg.qr(a)
    q = q * jnp.sign(jnp.diagonal(r))[None, :]
    if rows < cols:
        q = q.T
    return gain * q[:rows, :cols]


def make_params(key, obs_dim, hidden_dim, n_actions):
    """Per-layer params matching ActorCriticPolicy.__init__ (n_layers=2, ReLU).

    nn.Linear weights are built as (out, in) with orthogonal(gain=sqrt(2)) / zero
    bias, then transposed to (in, out) for the kernel layout.
    """
    gain = float(jnp.sqrt(2.0))
    keys = jax.random.split(key, 6)

    def linear_params(k, in_dim, out_dim, g):
        w_torch = _orthogonal(k, (out_dim, in_dim), g)   # (out, in) as nn.Linear
        return jnp.asarray(w_torch.T, jnp.float32), jnp.zeros((out_dim,), jnp.float32)

    wa1, ba1 = linear_params(keys[0], obs_dim, hidden_dim, gain)
    wa2, ba2 = linear_params(keys[1], hidden_dim, hidden_dim, gain)
    wc1, bc1 = linear_params(keys[2], obs_dim, hidden_dim, gain)
    wc2, bc2 = linear_params(keys[3], hidden_dim, hidden_dim, gain)
    wcv, bcv = linear_params(keys[4], hidden_dim, 1, gain)
    wd, bd = linear_params(keys[5], hidden_dim, n_actions, 0.01)  # Categorical head

    return dict(wa1=wa1, ba1=ba1, wa2=wa2, ba2=ba2,
                wc1=wc1, bc1=bc1, wc2=wc2, bc2=bc2,
                wcv=wcv, bcv=bcv, wd=wd, bd=bd)


def fuse_params(p, obs_dim, hidden_dim, n_actions):
    """Pack per-layer params into the fused kernel slabs (done once, host side)."""
    H, A = hidden_dim, n_actions

    w1 = jnp.concatenate([p["wa1"], p["wc1"]], axis=1)               # (obs, 2H)
    b1 = jnp.concatenate([p["ba1"], p["bc1"]], axis=0)               # (2H,)

    w2 = jnp.zeros((2 * H, 2 * H), jnp.float32)                      # blockdiag
    w2 = w2.at[:H, :H].set(p["wa2"]).at[H:, H:].set(p["wc2"])
    b2 = jnp.concatenate([p["ba2"], p["bc2"]], axis=0)

    out_pad = _round_up(H + A + 1, 128)   # total output slab width (lane dense)
    head_w = out_pad - H
    wh = jnp.zeros((2 * H, head_w), jnp.float32)
    wh = wh.at[:H, :A].set(p["wd"]).at[H:, A:A + 1].set(p["wcv"])
    bh = jnp.zeros((head_w,), jnp.float32)
    bh = bh.at[:A].set(p["bd"]).at[A].set(p["bcv"][0])

    bw = max(2 * H, head_w)
    b = jnp.zeros((3, bw), jnp.float32)
    b = b.at[0, :2 * H].set(b1).at[1, :2 * H].set(b2).at[2, :head_w].set(bh)

    return dict(w1=w1, w2=w2, wh=wh, b=b)


# ----------------------------------- main -------------------------------------

if __name__ == "__main__":
    # Small shapes consistent with the module:
    #   obs_shape (flat) = 16, hidden_dim = 32, n_layers = 2, Categorical(6), batch = 8.
    batch, obs_dim, hidden_dim, n_actions = 8, 16, 32, 6

    key = jax.random.PRNGKey(0)
    k_params, k_x = jax.random.split(key)

    raw = make_params(k_params, obs_dim, hidden_dim, n_actions)
    fused = fuse_params(raw, obs_dim, hidden_dim, n_actions)
    x = jax.random.normal(k_x, (batch, obs_dim), dtype=jnp.float32)

    value, hidden_actor, logits = actor_critic_forward(
        x, fused, hidden_dim=hidden_dim, n_actions=n_actions)
    jax.block_until_ready((value, hidden_actor, logits))

    # Pure-JAX reference of the same math on the un-fused parameters.
    def ref(x, p):
        relu = lambda h: jnp.maximum(h, 0.0)
        ha = relu(x @ p["wa1"] + p["ba1"])
        ha = relu(ha @ p["wa2"] + p["ba2"])
        hc = relu(x @ p["wc1"] + p["bc1"])
        hc = relu(hc @ p["wc2"] + p["bc2"])
        v = hc @ p["wcv"] + p["bcv"]
        lg = ha @ p["wd"] + p["bd"]
        return v, ha, lg

    v_ref, h_ref, l_ref = ref(x, raw)
    assert value.shape == (batch, 1)
    assert hidden_actor.shape == (batch, hidden_dim)
    assert logits.shape == (batch, n_actions)
    assert jnp.allclose(value, v_ref, rtol=1e-4, atol=1e-4)
    assert jnp.allclose(hidden_actor, h_ref, rtol=1e-4, atol=1e-4)
    assert jnp.allclose(logits, l_ref, rtol=1e-4, atol=1e-4)

    # TODO(synk): Categorical dist.sample()/log_probs()/entropy() (stochastic head)
    # are not kerneled; only the deterministic forward (value, hidden, logits) is.
    print("KERNEL_OK")
</pallas_src>

<mosaic_0001>
module attributes {stable_mosaic.version = 11 : i64} {
  func.func @_actor_critic_kernel(%arg0: i32, %arg1: memref<8x16xf32, #tpu.memory_space<vmem>>, %arg2: memref<16x64xf32, #tpu.memory_space<vmem>>, %arg3: memref<64x64xf32, #tpu.memory_space<vmem>>, %arg4: memref<64x96xf32, #tpu.memory_space<vmem>>, %arg5: memref<3x96xf32, #tpu.memory_space<vmem>>, %arg6: memref<8x128xf32, #tpu.memory_space<vmem>>) attributes {dimension_semantics = [#tpu.dimension_semantics<parallel>], iteration_bounds = array<i64: 1>, scalar_prefetch = 0 : i64, scratch_operands = 0 : i64, tpu.core_type = #tpu.core_type<tc>, window_params = [{transform_indices = @transform_0, window_bounds = array<i64: 8, 16>}, {pipeline_mode = #tpu.pipeline_mode<synchronous>, transform_indices = @transform_1, window_bounds = array<i64: 16, 64>}, {pipeline_mode = #tpu.pipeline_mode<synchronous>, transform_indices = @transform_2, window_bounds = array<i64: 64, 64>}, {pipeline_mode = #tpu.pipeline_mode<synchronous>, transform_indices = @transform_3, window_bounds = array<i64: 64, 96>}, {pipeline_mode = #tpu.pipeline_mode<synchronous>, transform_indices = @transform_4, window_bounds = array<i64: 3, 96>}, {transform_indices = @transform_5, window_bounds = array<i64: 8, 128>}]} {
    %c0 = arith.constant 0 : index
    %c0_0 = arith.constant 0 : index
    %0 = vector.load %arg1[%c0, %c0_0] : memref<8x16xf32, #tpu.memory_space<vmem>>, vector<8x16xf32>
    %c0_1 = arith.constant 0 : index
    %c0_2 = arith.constant 0 : index
    %1 = vector.load %arg5[%c0_1, %c0_2] : memref<3x96xf32, #tpu.memory_space<vmem>>, vector<1x64xf32>
    %c1 = arith.constant 1 : index
    %c0_3 = arith.constant 0 : index
    %2 = vector.load %arg5[%c1, %c0_3] : memref<3x96xf32, #tpu.memory_space<vmem>>, vector<1x64xf32>
    %c2 = arith.constant 2 : index
    %c0_4 = arith.constant 0 : index
    %3 = vector.load %arg5[%c2, %c0_4] : memref<3x96xf32, #tpu.memory_space<vmem>>, vector<1x96xf32>
    %c0_5 = arith.constant 0 : index
    %c0_6 = arith.constant 0 : index
    %4 = vector.load %arg2[%c0_5, %c0_6] : memref<16x64xf32, #tpu.memory_space<vmem>>, vector<16x64xf32>
    %cst = arith.constant dense<0.000000e+00> : vector<8x64xf32>
    %5 = tpu.matmul %0, %4, %cst {dimension_numbers = #tpu.dot_dimension_numbers<[1], [0], [0], [1], [0, 0, 1, 1], [], []>} : vector<8x16xf32>, vector<16x64xf32>, vector<8x64xf32> -> vector<8x64xf32>
    %6 = vector.broadcast %1 : vector<1x64xf32> to vector<8x64xf32>
    %7 = arith.addf %5, %6 : vector<8x64xf32>
    %cst_7 = arith.constant 0.000000e+00 : f32
    %8 = vector.broadcast %cst_7 : f32 to vector<8x64xf32>
    %9 = arith.maximumf %7, %8 : vector<8x64xf32>
    %c0_8 = arith.constant 0 : index
    %c0_9 = arith.constant 0 : index
    %10 = vector.load %arg3[%c0_8, %c0_9] : memref<64x64xf32, #tpu.memory_space<vmem>>, vector<64x64xf32>
    %cst_10 = arith.constant dense<0.000000e+00> : vector<8x64xf32>
    %11 = tpu.matmul %9, %10, %cst_10 {dimension_numbers = #tpu.dot_dimension_numbers<[1], [0], [0], [1], [0, 0, 1, 1], [], []>} : vector<8x64xf32>, vector<64x64xf32>, vector<8x64xf32> -> vector<8x64xf32>
    %12 = vector.broadcast %2 : vector<1x64xf32> to vector<8x64xf32>
    %13 = arith.addf %11, %12 : vector<8x64xf32>
    %cst_11 = arith.constant 0.000000e+00 : f32
    %14 = vector.broadcast %cst_11 : f32 to vector<8x64xf32>
    %15 = arith.maximumf %13, %14 : vector<8x64xf32>
    %c0_12 = arith.constant 0 : index
    %c0_13 = arith.constant 0 : index
    %16 = vector.load %arg4[%c0_12, %c0_13] : memref<64x96xf32, #tpu.memory_space<vmem>>, vector<64x96xf32>
    %cst_14 = arith.constant dense<0.000000e+00> : vector<8x96xf32>
    %17 = tpu.matmul %15, %16, %cst_14 {dimension_numbers = #tpu.dot_dimension_numbers<[1], [0], [0], [1], [0, 0, 1, 1], [], []>} : vector<8x64xf32>, vector<64x96xf32>, vector<8x96xf32> -> vector<8x96xf32>
    %18 = vector.broadcast %3 : vector<1x96xf32> to vector<8x96xf32>
    %19 = arith.addf %17, %18 : vector<8x96xf32>
    %20 = vector.extract_strided_slice %15 {offsets = [0, 0], sizes = [8, 32], strides = [1, 1]} : vector<8x64xf32> to vector<8x32xf32>
    %21 = tpu.concatenate %20, %19 in 1 : vector<8x32xf32>, vector<8x96xf32> -> vector<8x128xf32>
    %c0_15 = arith.constant 0 : index
    %c0_16 = arith.constant 0 : index
    %22 = vector.load %arg6[%c0_15, %c0_16] : memref<8x128xf32, #tpu.memory_space<vmem>>, vector<8x128xf32>
    tpu.vector_store %arg6[%c0_15, %c0_16], %21 {strides = array<i32>} : memref<8x128xf32, #tpu.memory_space<vmem>>, vector<8x128xf32>,
    return
  }
  func.func @transform_0(%arg0: i32) -> (i32, i32) {
    %c0_i32 = arith.constant 0 : i32
    %c0_i32_0 = arith.constant 0 : i32
    return %arg0, %c0_i32 : i32, i32
  }
  func.func @transform_1(%arg0: i32) -> (i32, i32) {
    %c0_i32 = arith.constant 0 : i32
    %c0_i32_0 = arith.constant 0 : i32
    %c0_i32_1 = arith.constant 0 : i32
    return %c0_i32, %c0_i32_0 : i32, i32
  }
  func.func @transform_2(%arg0: i32) -> (i32, i32) {
    %c0_i32 = arith.constant 0 : i32
    %c0_i32_0 = arith.constant 0 : i32
    %c0_i32_1 = arith.constant 0 : i32
    return %c0_i32, %c0_i32_0 : i32, i32
  }
  func.func @transform_3(%arg0: i32) -> (i32, i32) {
    %c0_i32 = arith.constant 0 : i32
    %c0_i32_0 = arith.constant 0 : i32
    %c0_i32_1 = arith.constant 0 : i32
    return %c0_i32, %c0_i32_0 : i32, i32
  }
  func.func @transform_4(%arg0: i32) -> (i32, i32) {
    %c0_i32 = arith.constant 0 : i32
    %c0_i32_0 = arith.constant 0 : i32
    %c0_i32_1 = arith.constant 0 : i32
    return %c0_i32, %c0_i32_0 : i32, i32
  }
  func.func @transform_5(%arg0: i32) -> (i32, i32) {
    %c0_i32 = arith.constant 0 : i32
    %c0_i32_0 = arith.constant 0 : i32
    return %arg0, %c0_i32 : i32, i32
  }
}

</mosaic_0001>

<llo_original>
// kernel: tpu_custom_call.1
$region0: #{tpu_custom_call.1}
  #allocation0 [shape = 'u32[]', space=smem, size = 0x4, offset = 0x4, fixed_abs, tag = 'smem constant byte address 0x4 - core index']
  #allocation1 [shape = 'u32[144,128]{1,0:T(1,128)}', space=vmem, size = 0x12000, scoped, tag = 'internal scratch']
  %s0 = inlined_call_operand.hbm [shape: f32[8,16], index: 0, kind: input, shape index: {}]
  %s1 = inlined_call_operand.hbm [shape: f32[16,64], index: 1, kind: input, shape index: {}]
  %s2 = inlined_call_operand.hbm [shape: f32[64,64], index: 2, kind: input, shape index: {}]
  %s3 = inlined_call_operand.hbm [shape: f32[64,96], index: 3, kind: input, shape index: {}]
  %s4 = inlined_call_operand.vmem [shape: f32[3,96], index: 4, kind: input, shape index: {}]
  %s5 = inlined_call_operand.hbm [shape: f32[8,128], index: 5, kind: output, shape index: {}]
  %s6 = sld [smem:[#allocation0]]
  $region46: #{tpu_custom_call.1} parent=0
    _
  %s8 = ssub.s32 1, %s6
  %s9 = scalar_select 0, %s8, %s6
  $region1: #{tpu_custom_call.1} parent=0
    #allocation2 [shape = 'u8[4096]{0}', space=vmem, size = 0x1000, scoped, tag = 'input window, operand 0, single buffered']
    #allocation3 [shape = 's32[1]{0}', space=sflag, size = 0x4, scoped, tag = 'scoped memory for tpu_custom_call.1']
    #allocation4 [shape = 's32[1]{0}', space=sflag, size = 0x4, scoped, tag = 'scoped memory for tpu_custom_call.1']
    #allocation5 [shape = 'u8[8192]{0}', space=vmem, size = 0x2000, scoped, tag = 'input window, operand 1, single buffered']
    #allocation6 [shape = 's32[1]{0}', space=sflag, size = 0x4, scoped, tag = 'scoped memory for tpu_custom_call.1']
    #allocation7 [shape = 'u8[32768]{0}', space=vmem, size = 0x8000, scoped, tag = 'input window, operand 2, single buffered']
    #allocation8 [shape = 'u8[32768]{0}', space=vmem, size = 0x8000, scoped, tag = 'input window, operand 3, single buffered']
    #allocation9 [shape = 's32[1]{0}', space=sflag, size = 0x4, scoped, tag = 'scoped memory for tpu_custom_call.1']
    #allocation10 [shape = 'u8[4096]{0}', space=vmem, size = 0x1000, scoped, tag = 'output window, operand 0, single buffered']
    %10 = vsyncpa [#allocation3], 0
    %11 = vsyncpa [#allocation6], 0
    %12 = vsyncpa [#allocation9], 0
    %13 = vsyncpa [#allocation4], 0
    // Predicated region
    $region2: #{tpu_custom_call.1} parent=1 // pred_check
      _
    $region3: #{tpu_custom_call.1} parent=1 // pred_check_branch
      %15 = sbr.rel (0) target = $region5
    $region4: #{tpu_custom_call.1} parent=1 // pred_region
      %s17 = ssub.s32 128, 128
      %18 = vsyncadd [#allocation3], %s17
      %s20 = sshll.u32 [#allocation2], 4
      %s21 = int_to_ptr.vmem [resolvable:$true] %s20
      %23 = dma.hbm_to_vmem [thread:$0]  %s0, 128, %s21, [#allocation3]
    $region5: #{tpu_custom_call.1} parent=1 // pred_fallthru
      _
    // Predicated region
    $region6: #{tpu_custom_call.1} parent=1 // pred_check
      _
    $region7: #{tpu_custom_call.1} parent=1 // pred_check_branch
      %25 = sbr.rel (0) target = $region9
    $region8: #{tpu_custom_call.1} parent=1 // pred_region
      %s27 = ssub.s32 256, 256
      %28 = vsyncadd [#allocation6], %s27
      %s29 = sshll.u32 [#allocation5], 4
      %s30 = int_to_ptr.vmem [resolvable:$true] %s29
      %35 = dma.hbm_to_vmem [thread:$0]  %s1, 256, %s30, [#allocation6], 128, 128, 8
    $region9: #{tpu_custom_call.1} parent=1 // pred_fallthru
      _
    // Predicated region
    $region10: #{tpu_custom_call.1} parent=1 // pred_check
      _
    $region11: #{tpu_custom_call.1} parent=1 // pred_check_branch
      %37 = sbr.rel (0) target = $region13
    $region12: #{tpu_custom_call.1} parent=1 // pred_region
      %s39 = ssub.s32 1024, 1024
      %40 = vsyncadd [#allocation6], %s39
      %s41 = sshll.u32 [#allocation7], 4
      %s42 = int_to_ptr.vmem [resolvable:$true] %s41
      %47 = dma.hbm_to_vmem [thread:$0]  %s2, 1024, %s42, [#allocation6], 128, 128, 8
    $region13: #{tpu_custom_call.1} parent=1 // pred_fallthru
      _
    // Predicated region
    $region14: #{tpu_custom_call.1} parent=1 // pred_check
      _
    $region15: #{tpu_custom_call.1} parent=1 // pred_check_branch
      %49 = sbr.rel (0) target = $region17
    $region16: #{tpu_custom_call.1} parent=1 // pred_region
      %s51 = ssub.s32 1024, 1024
      %52 = vsyncadd [#allocation9], %s51
      %s53 = sshll.u32 [#allocation8], 4
      %s54 = int_to_ptr.vmem [resolvable:$true] %s53
      %59 = dma.hbm_to_vmem [thread:$0]  %s3, 1024, %s54, [#allocation9], 128, 128, 8
    $region17: #{tpu_custom_call.1} parent=1 // pred_fallthru
      _
    // Predicated region
    $region18: #{tpu_custom_call.1} parent=1 // pred_check
      _
    $region19: #{tpu_custom_call.1} parent=1 // pred_check_branch
      %61 = sbr.rel (0) target = $region21
    $region20: #{tpu_custom_call.1} parent=1 // pred_region
      _
    $region21: #{tpu_custom_call.1} parent=1 // pred_fallthru
      _
    // Predicated region
    $region22: #{tpu_custom_call.1} parent=1 // pred_check
      _
    $region23: #{tpu_custom_call.1} parent=1 // pred_check_branch
      %63 = sbr.rel (0) target = $region25
    $region24: #{tpu_custom_call.1} parent=1 // pred_region
      %64 = dma.done [#allocation3], 128
    $region25: #{tpu_custom_call.1} parent=1 // pred_fallthru
      _
    // Predicated region
    $region26: #{tpu_custom_call.1} parent=1 // pred_check
      _
    $region27: #{tpu_custom_call.1} parent=1 // pred_check_branch
      %66 = sbr.rel (0) target = $region29
    $region28: #{tpu_custom_call.1} parent=1 // pred_region
      %67 = dma.done [#allocation6], 256
    $region29: #{tpu_custom_call.1} parent=1 // pred_fallthru
      _
    // Predicated region
    $region30: #{tpu_custom_call.1} parent=1 // pred_check
      _
    $region31: #{tpu_custom_call.1} parent=1 // pred_check_branch
      %69 = sbr.rel (0) target = $region33
    $region32: #{tpu_custom_call.1} parent=1 // pred_region
      %70 = dma.done [#allocation6], 1024
    $region33: #{tpu_custom_call.1} parent=1 // pred_fallthru
      _
    // Predicated region
    $region34: #{tpu_custom_call.1} parent=1 // pred_check
      _
    $region35: #{tpu_custom_call.1} parent=1 // pred_check_branch
      %72 = sbr.rel (0) target = $region37
    $region36: #{tpu_custom_call.1} parent=1 // pred_region
      %73 = dma.done [#allocation9], 1024
    $region37: #{tpu_custom_call.1} parent=1 // pred_fallthru
      _
    %v74 = vld [vmem:[#allocation2] sm:$0xff]
    %v75 = vld [vmem:[%s4] sm:$0x1]
    %v76 = vld [vmem:[%s4 + $0x1] sm:$0x1]
    %v77 = vld [vmem:[%s4 + $0x2] sm:$0x1]
    %v78 = vld [vmem:[#allocation5] sm:$0xff]
    %v79 = vld [vmem:[#allocation5 + $0x8] sm:$0xff]
    %v80 = vlaneseq
    %v81 = vshrl.u32 %v80, 7
    %v82 = vsub.s32 0, %v81
    %v83 = vrot.slane %v75, %v82
    %vm84 = vcmask 130048
    %v86 = vsel %vm84, %v74, 0
    %88 = vmatprep.subr.mxu0 0.0
    %89 = vmatpush1.msra.mxu0 0.0
    %90 = vmatprep.subr.mxu0 0.0
    %91 = vmatpush1.msra.mxu0 0.0
    %92 = vmatprep.subr.mxu0 0.0
    %93 = vmatpush1.msra.mxu0 0.0
    %94 = vmatprep.subr.mxu0 0.0
    %95 = vmatpush1.msra.mxu0 0.0
    %96 = vmatprep.subr.mxu0 0.0
    %97 = vmatpush1.msra.mxu0 0.0
    %98 = vmatprep.subr.mxu0 0.0
    %99 = vmatpush1.msra.mxu0 0.0
    %100 = vmatprep.subr.mxu0 0.0
    %101 = vmatpush1.msra.mxu0 0.0
    %102 = vmatprep.subr.mxu0 0.0
    %103 = vmatpush1.msra.mxu0 0.0
    %104 = vmatprep.subr.mxu0 0.0
    %105 = vmatpush1.msra.mxu0 0.0
    %106 = vmatprep.subr.mxu0 0.0
    %107 = vmatpush1.msra.mxu0 0.0
    %108 = vmatprep.subr.mxu0 0.0
    %109 = vmatpush1.msra.mxu0 0.0
    %110 = vmatprep.subr.mxu0 0.0
    %111 = vmatpush1.msra.mxu0 0.0
    %112 = vmatprep.subr.mxu0 0.0
    %113 = vmatpush1.msra.mxu0 0.0
    %114 = vmatprep.subr.mxu0 0.0
    %115 = vmatpush1.msra.mxu0 0.0
    %116 = vmatprep.subr.mxu0 0.0
    %117 = vmatpush1.msra.mxu0 %v79
    %118 = vmatprep.subr.mxu0 0.0
    %119 = vmatpush1.msra.mxu0 %v78
    %120 = vmatprep.subr.mxu0 0.0
    %121 = vmatpush2.msra.mxu0 0.0
    %122 = vmatprep.subr.mxu0 0.0
    %123 = vmatpush2.msra.mxu0 0.0
    %124 = vmatprep.subr.mxu0 0.0
    %125 = vmatpush2.msra.mxu0 0.0
    %126 = vmatprep.subr.mxu0 0.0
    %127 = vmatpush2.msra.mxu0 0.0
    %128 = vmatprep.subr.mxu0 0.0
    %129 = vmatpush2.msra.mxu0 0.0
    %130 = vmatprep.subr.mxu0 0.0
    %131 = vmatpush2.msra.mxu0 0.0
    %132 = vmatprep.subr.mxu0 0.0
    %133 = vmatpush2.msra.mxu0 0.0
    %134 = vmatprep.subr.mxu0 0.0
    %135 = vmatpush2.msra.mxu0 0.0
    %136 = vmatprep.subr.mxu0 0.0
    %137 = vmatpush2.msra.mxu0 0.0
    %138 = vmatprep.subr.mxu0 0.0
    %139 = vmatpush2.msra.mxu0 0.0
    %140 = vmatprep.subr.mxu0 0.0
    %141 = vmatpush2.msra.mxu0 0.0
    %142 = vmatprep.subr.mxu0 0.0
    %143 = vmatpush2.msra.mxu0 0.0
    %144 = vmatprep.subr.mxu0 0.0
    %145 = vmatpush2.msra.mxu0 0.0
    %146 = vmatprep.subr.mxu0 0.0
    %147 = vmatpush2.msra.mxu0 0.0
    %148 = vmatprep.subr.mxu0 0.0
    %149 = vmatpush2.msra.mxu0 0.0
    %150 = vmatprep.subr.mxu0 0.0
    %151 = vmatpush2.msra.mxu0 0.0
    %152 = vmatprep.mubr.f32.mxu0 0.0
    %153 = vmatmul.mubr.f32.gmra.mxu0 %v86
    %v154 = vpop.f32.mrf.mxu0
    %v155 = vadd.f32 %v83, %v154
    %v156 = vpop.f32.mrf.mxu0
    %157 = vdwg.mxu0
    %v158 = vmax.f32 %v155, 0.0
    %v159 = vld [vmem:[#allocation7] sm:$0xff]
    %v160 = vld [vmem:[#allocation7 + $0x8] sm:$0xff]
    %v161 = vld [vmem:[#allocation7 + $0x10] sm:$0xff]
    %v162 = vld [vmem:[#allocation7 + $0x18] sm:$0xff]
    %v163 = vld [vmem:[#allocation7 + $0x20] sm:$0xff]
    %v164 = vld [vmem:[#allocation7 + $0x28] sm:$0xff]
    %v165 = vld [vmem:[#allocation7 + $0x30] sm:$0xff]
    %v166 = vld [vmem:[#allocation7 + $0x38] sm:$0xff]
    %v167 = vlaneseq
    %v168 = vshrl.u32 %v167, 7
    %v169 = vsub.s32 0, %v168
    %v170 = vrot.slane %v76, %v169
    %vm171 = vcmask 523264
    %v173 = vsel %vm171, %v158, 0
    %175 = vmatprep.subr.mxu0 0.0
    %176 = vmatpush1.msra.mxu0 0.0
    %177 = vmatprep.subr.mxu0 0.0
    %178 = vmatpush1.msra.mxu0 0.0
    %179 = vmatprep.subr.mxu0 0.0
    %180 = vmatpush1.msra.mxu0 0.0
    %181 = vmatprep.subr.mxu0 0.0
    %182 = vmatpush1.msra.mxu0 0.0
    %183 = vmatprep.subr.mxu0 0.0
    %184 = vmatpush1.msra.mxu0 0.0
    %185 = vmatprep.subr.mxu0 0.0
    %186 = vmatpush1.msra.mxu0 0.0
    %187 = vmatprep.subr.mxu0 0.0
    %188 = vmatpush1.msra.mxu0 0.0
    %189 = vmatprep.subr.mxu0 0.0
    %190 = vmatpush1.msra.mxu0 0.0
    %191 = vmatprep.subr.mxu0 0.0
    %192 = vmatpush1.msra.mxu0 %v166
    %193 = vmatprep.subr.mxu0 0.0
    %194 = vmatpush1.msra.mxu0 %v165
    %195 = vmatprep.subr.mxu0 0.0
    %196 = vmatpush1.msra.mxu0 %v164
    %197 = vmatprep.subr.mxu0 0.0
    %198 = vmatpush1.msra.mxu0 %v163
    %199 = vmatprep.subr.mxu0 0.0
    %200 = vmatpush1.msra.mxu0 %v162
    %201 = vmatprep.subr.mxu0 0.0
    %202 = vmatpush1.msra.mxu0 %v161
    %203 = vmatprep.subr.mxu0 0.0
    %204 = vmatpush1.msra.mxu0 %v160
    %205 = vmatprep.subr.mxu0 0.0
    %206 = vmatpush1.msra.mxu0 %v159
    %207 = vmatprep.subr.mxu0 0.0
    %208 = vmatpush2.msra.mxu0 0.0
    %209 = vmatprep.subr.mxu0 0.0
    %210 = vmatpush2.msra.mxu0 0.0
    %211 = vmatprep.subr.mxu0 0.0
    %212 = vmatpush2.msra.mxu0 0.0
    %213 = vmatprep.subr.mxu0 0.0
    %214 = vmatpush2.msra.mxu0 0.0
    %215 = vmatprep.subr.mxu0 0.0
    %216 = vmatpush2.msra.mxu0 0.0
    %217 = vmatprep.subr.mxu0 0.0
    %218 = vmatpush2.msra.mxu0 0.0
    %219 = vmatprep.subr.mxu0 0.0
    %220 = vmatpush2.msra.mxu0 0.0
    %221 = vmatprep.subr.mxu0 0.0
    %222 = vmatpush2.msra.mxu0 0.0
    %223 = vmatprep.subr.mxu0 0.0
    %224 = vmatpush2.msra.mxu0 0.0
    %225 = vmatprep.subr.mxu0 0.0
    %226 = vmatpush2.msra.mxu0 0.0
    %227 = vmatprep.subr.mxu0 0.0
    %228 = vmatpush2.msra.mxu0 0.0
    %229 = vmatprep.subr.mxu0 0.0
    %230 = vmatpush2.msra.mxu0 0.0
    %231 = vmatprep.subr.mxu0 0.0
    %232 = vmatpush2.msra.mxu0 0.0
    %233 = vmatprep.subr.mxu0 0.0
    %234 = vmatpush2.msra.mxu0 0.0
    %235 = vmatprep.subr.mxu0 0.0
    %236 = vmatpush2.msra.mxu0 0.0
    %237 = vmatprep.subr.mxu0 0.0
    %238 = vmatpush2.msra.mxu0 0.0
    %239 = vmatprep.mubr.f32.mxu0 0.0
    %240 = vmatmul.mubr.f32.gmra.mxu0 %v173
    %v241 = vpop.f32.mrf.mxu0
    %v242 = vadd.f32 %v170, %v241
    %v243 = vpop.f32.mrf.mxu0
    %244 = vdwg.mxu0
    %v245 = vmax.f32 %v242, 0.0
    %v246 = vld [vmem:[#allocation8] sm:$0xff]
    %v247 = vld [vmem:[#allocation8 + $0x8] sm:$0xff]
    %v248 = vld [vmem:[#allocation8 + $0x10] sm:$0xff]
    %v249 = vld [vmem:[#allocation8 + $0x18] sm:$0xff]
    %v250 = vld [vmem:[#allocation8 + $0x20] sm:$0xff]
    %v251 = vld [vmem:[#allocation8 + $0x28] sm:$0xff]
    %v252 = vld [vmem:[#allocation8 + $0x30] sm:$0xff]
    %v253 = vld [vmem:[#allocation8 + $0x38] sm:$0xff]
    %v254 = vlaneseq
    %v255 = vshrl.u32 %v254, 7
    %v256 = vsub.s32 0, %v255
    %v257 = vrot.slane %v77, %v256
    %v259 = vsel %vm171, %v245, 0
    %261 = vmatprep.subr.mxu0 0.0
    %262 = vmatpush1.msra.mxu0 0.0
    %263 = vmatprep.subr.mxu0 0.0
    %264 = vmatpush1.msra.mxu0 0.0
    %265 = vmatprep.subr.mxu0 0.0
    %266 = vmatpush1.msra.mxu0 0.0
    %267 = vmatprep.subr.mxu0 0.0
    %268 = vmatpush1.msra.mxu0 0.0
    %269 = vmatprep.subr.mxu0 0.0
    %270 = vmatpush1.msra.mxu0 0.0
    %271 = vmatprep.subr.mxu0 0.0
    %272 = vmatpush1.msra.mxu0 0.0
    %273 = vmatprep.subr.mxu0 0.0
    %274 = vmatpush1.msra.mxu0 0.0
    %275 = vmatprep.subr.mxu0 0.0
    %276 = vmatpush1.msra.mxu0 0.0
    %277 = vmatprep.subr.mxu0 0.0
    %278 = vmatpush1.msra.mxu0 %v253
    %279 = vmatprep.subr.mxu0 0.0
    %280 = vmatpush1.msra.mxu0 %v252
    %281 = vmatprep.subr.mxu0 0.0
    %282 = vmatpush1.msra.mxu0 %v251
    %283 = vmatprep.subr.mxu0 0.0
    %284 = vmatpush1.msra.mxu0 %v250
    %285 = vmatprep.subr.mxu0 0.0
    %286 = vmatpush1.msra.mxu0 %v249
    %287 = vmatprep.subr.mxu0 0.0
    %288 = vmatpush1.msra.mxu0 %v248
    %289 = vmatprep.subr.mxu0 0.0
    %290 = vmatpush1.msra.mxu0 %v247
    %291 = vmatprep.subr.mxu0 0.0
    %292 = vmatpush1.msra.mxu0 %v246
    %293 = vmatprep.subr.mxu0 0.0
    %294 = vmatpush2.msra.mxu0 0.0
    %295 = vmatprep.subr.mxu0 0.0
    %296 = vmatpush2.msra.mxu0 0.0
    %297 = vmatprep.subr.mxu0 0.0
    %298 = vmatpush2.msra.mxu0 0.0
    %299 = vmatprep.subr.mxu0 0.0
    %300 = vmatpush2.msra.mxu0 0.0
    %301 = vmatprep.subr.mxu0 0.0
    %302 = vmatpush2.msra.mxu0 0.0
    %303 = vmatprep.subr.mxu0 0.0
    %304 = vmatpush2.msra.mxu0 0.0
    %305 = vmatprep.subr.mxu0 0.0
    %306 = vmatpush2.msra.mxu0 0.0
    %307 = vmatprep.subr.mxu0 0.0
    %308 = vmatpush2.msra.mxu0 0.0
    %309 = vmatprep.subr.mxu0 0.0
    %310 = vmatpush2.msra.mxu0 0.0
    %311 = vmatprep.subr.mxu0 0.0
    %312 = vmatpush2.msra.mxu0 0.0
    %313 = vmatprep.subr.mxu0 0.0
    %314 = vmatpush2.msra.mxu0 0.0
    %315 = vmatprep.subr.mxu0 0.0
    %316 = vmatpush2.msra.mxu0 0.0
    %317 = vmatprep.subr.mxu0 0.0
    %318 = vmatpush2.msra.mxu0 0.0
    %319 = vmatprep.subr.mxu0 0.0
    %320 = vmatpush2.msra.mxu0 0.0
    %321 = vmatprep.subr.mxu0 0.0
    %322 = vmatpush2.msra.mxu0 0.0
    %323 = vmatprep.subr.mxu0 0.0
    %324 = vmatpush2.msra.mxu0 0.0
    %325 = vmatprep.mubr.f32.mxu0 0.0
    %326 = vmatmul.mubr.f32.gmra.mxu0 %v259
    %v327 = vpop.f32.mrf.mxu0
    %v328 = vadd.f32 %v257, %v327
    %v329 = vpop.f32.mrf.mxu0
    %330 = vdwg.mxu0
    %332 = vrot.lane.b32.xlu0 %v328, 32
    %v333 = vpop.permute.xlu0 %332
    %vm335 = vcmask 261120
    %v336 = vsel %vm335, %v245, %v333
    %337 = vst [vmem:[#allocation10] sm:$0xff] %v336
    // Predicated region
    $region38: #{tpu_custom_call.1} parent=1 // pred_check
      _
    $region39: #{tpu_custom_call.1} parent=1 // pred_check_branch
      %339 = sbr.rel (0) target = $region41
    $region40: #{tpu_custom_call.1} parent=1 // pred_region
      %s341 = ssub.s32 128, 128
      %342 = vsyncadd [#allocation4], %s341
      %s344 = sshll.u32 [#allocation10], 4
      %s345 = int_to_ptr.vmem [resolvable:$true] %s344
      %347 = dma.vmem_to_hbm [thread:$0]  %s345, 128, %s5, [#allocation4]
    $region41: #{tpu_custom_call.1} parent=1 // pred_fallthru
      _
    // Predicated region
    $region42: #{tpu_custom_call.1} parent=1 // pred_check
      _
    $region43: #{tpu_custom_call.1} parent=1 // pred_check_branch
      %349 = sbr.rel (0) target = $region45
    $region44: #{tpu_custom_call.1} parent=1 // pred_region
      %350 = dma.done [#allocation4], 128
    $region45: #{tpu_custom_call.1} parent=1 // pred_fallthru
      _
    %351 = vsyncpa [#allocation3], 1
    %352 = vsyncpa [#allocation6], 1
    %353 = vsyncpa [#allocation9], 1
    %354 = vsyncpa [#allocation4], 1

</llo_original>
